<compile_context>
chip_gen: v7x
topology: tpu7x:2x2x1
jax: 0.10.0
libtpu: 0.0.40
codegen_flags: <defaults>
</compile_context>

<pallas_src>
import functools

import jax
import jax.numpy as jnp
from jax.experimental import pallas as pl
from jax.experimental.pallas import tpu as pltpu


def _round_up(x, m):
    return (x + m - 1) // m * m


# ---------------------------------------------------------------------------
# Kernel 1: one LSTM layer per grid step; activation carried in VMEM scratch.
# ---------------------------------------------------------------------------
def _lstm_layer_kernel(x0_ref, h_ref, c_ref, w_ref, b_ref,
                       h_out_ref, c_out_ref, htop_ref, xh_ref, *, hp):
    l = pl.program_id(0)

    @pl.when(l == 0)
    def _():
        # Layer-0 input = (dropout(embedding)) -> identity in eval; already bf16.
        xh_ref[:, :hp] = x0_ref[...]

    # This layer's previous hidden state into the right half of the fused operand.
    xh_ref[:, hp:] = h_ref[0].astype(jnp.bfloat16)

    # Fused [x, h] @ [W_ih ; W_hh]^T (bf16 operands, f32 accumulation); bias
    # (bih + bhh) pre-folded.  Gate blocks sit at 128-aligned column offsets.
    gates = (jnp.dot(xh_ref[...], w_ref[0], preferred_element_type=jnp.float32)
             + b_ref[0])                                    # (Bp, 4Hp)
    i_g = jax.nn.sigmoid(gates[:, 0 * hp:1 * hp])
    f_g = jax.nn.sigmoid(gates[:, 1 * hp:2 * hp])
    g_g = jnp.tanh(gates[:, 2 * hp:3 * hp])
    o_g = jax.nn.sigmoid(gates[:, 3 * hp:4 * hp])

    c_new = f_g * c_ref[0] + i_g * g_g
    h_new = o_g * jnp.tanh(c_new)
    h_out_ref[0] = h_new
    c_out_ref[0] = c_new

    h_bf16 = h_new.astype(jnp.bfloat16)
    xh_ref[:, :hp] = h_bf16        # next layer's input (inter-layer dropout = identity)
    htop_ref[...] = h_bf16         # last write (top layer) is what survives


# ---------------------------------------------------------------------------
# Kernel 2: fc_out projection, one lane-dense vocab tile per grid step.
# ---------------------------------------------------------------------------
def _fc_out_kernel(htop_ref, wout_ref, bout_ref, pred_ref):
    pred_ref[...] = (jnp.dot(htop_ref[...], wout_ref[...],
                             preferred_element_type=jnp.float32)
                     + bout_ref[...])                        # (Bp, TV) lane-dense


# ---------------------------------------------------------------------------
# One-time parameter packing (layout plumbing lives in the wrapper, not kernel).
# ---------------------------------------------------------------------------
def pack_decoder_params(params, *, num_layers, hidden_dim):
    embed = jnp.asarray(params["embedding"], jnp.float32)
    V, E = embed.shape
    H = hidden_dim
    L = num_layers
    # TODO(synk): embed_dim != hidden_dim would need a separately shaped layer-0
    # weight; only E == H is packed here (matches the stacked (L,4H,H) storage).
    assert E == H, "packing assumes embed_dim == hidden_dim"
    Hp = _round_up(H, 128)

    # Vocab tile: big (mem-bound streaming wants long DMA bursts; 512+ is where
    # the HBM roofline is reached), but bounded so 2 double-buffered bf16 W_out
    # tiles stay well under every generation's scoped VMEM, and kept >= 2 tiles
    # so v7x can shard the vocab axis across its 2 TensorCores.
    TV = 4096
    while TV > 128 and 2 * Hp * TV * 2 > (8 << 20):
        TV //= 2
    while TV > 128 and _round_up(V, TV) < 2 * TV:
        TV //= 2
    Vp = _round_up(V, TV)

    wih = jnp.asarray(params["wih"], jnp.float32)      # (L, 4H, H), gate order [i,f,g,o]
    whh = jnp.asarray(params["whh"], jnp.float32)      # (L, 4H, H)
    b = jnp.asarray(params["bih"], jnp.float32) + jnp.asarray(params["bhh"], jnp.float32)

    # Fused, pre-transposed, lane-padded weight: rows [0:H] = W_ih^T, rows
    # [Hp:Hp+H] = W_hh^T; each gate's H output columns sit at a 128-aligned
    # offset k*Hp.  Zero padding is exact in bf16 and keeps padded h/c at 0.
    w_cat = jnp.zeros((L, 2 * Hp, 4 * Hp), jnp.float32)
    bias = jnp.zeros((L, 1, 4 * Hp), jnp.float32)
    for l in range(L):
        for k in range(4):
            w_cat = w_cat.at[l, 0:H, k * Hp:k * Hp + H].set(wih[l, k * H:(k + 1) * H, :].T)
            w_cat = w_cat.at[l, Hp:Hp + H, k * Hp:k * Hp + H].set(whh[l, k * H:(k + 1) * H, :].T)
            bias = bias.at[l, 0, k * Hp:k * Hp + H].set(b[l, k * H:(k + 1) * H])

    wout_t = jnp.zeros((Hp, Vp), jnp.float32).at[:H, :V].set(
        jnp.asarray(params["wout"], jnp.float32).T)                  # (Hp, Vp), contraction-first
    bout_p = jnp.zeros((1, Vp), jnp.float32).at[:, :V].set(
        jnp.asarray(params["bout"], jnp.float32))

    return {
        "embedding": embed,
        "w_cat": w_cat.astype(jnp.bfloat16),           # bf16 MXU operands
        "bias": bias,                                  # folded bias, f32
        "wout_t": wout_t.astype(jnp.bfloat16),
        "bout": bout_p,
        "dims": (V, E, H, L, Hp, Vp, TV),
    }


def decoder_forward(token_ids, hidden, cell, packed):
    """input.unsqueeze(1) -> embedding -> dropout(eval) -> LSTM stack -> fc_out."""
    V, E, H, L, Hp, Vp, TV = packed["dims"]
    B = token_ids.shape[0]
    Bp = _round_up(B, 8)
    vmem_limit = 32 * 1024 * 1024   # explicit: v5e's scoped default is only 16 MiB

    # Embedding gather + dropout (identity in eval) -- plain-JAX glue; pad to
    # sublane/lane-dense shapes (zero padding is semantics-preserving for LSTM).
    emb = jnp.take(packed["embedding"], token_ids, axis=0)           # (B, E)
    emb_p = jnp.zeros((Bp, Hp), jnp.bfloat16).at[:B, :E].set(emb.astype(jnp.bfloat16))
    hidden_p = jnp.zeros((L, Bp, Hp), jnp.float32).at[:, :B, :H].set(hidden)
    cell_p = jnp.zeros((L, Bp, Hp), jnp.float32).at[:, :B, :H].set(cell)

    # ---- Kernel 1: LSTM stack, one layer per grid step (weights streamed). ----
    h_new_p, c_new_p, htop_p = pl.pallas_call(
        functools.partial(_lstm_layer_kernel, hp=Hp),
        out_shape=(
            jax.ShapeDtypeStruct((L, Bp, Hp), jnp.float32),
            jax.ShapeDtypeStruct((L, Bp, Hp), jnp.float32),
            jax.ShapeDtypeStruct((Bp, Hp), jnp.bfloat16),
        ),
        grid=(L,),
        in_specs=[
            pl.BlockSpec((Bp, Hp), lambda l: (0, 0)),                # embedding (resident)
            pl.BlockSpec((1, Bp, Hp), lambda l: (l, 0, 0)),          # h_{t-1}[l]
            pl.BlockSpec((1, Bp, Hp), lambda l: (l, 0, 0)),          # c_{t-1}[l]
            pl.BlockSpec((1, 2 * Hp, 4 * Hp), lambda l: (l, 0, 0)),  # fused weights (streamed)
            pl.BlockSpec((1, 1, 4 * Hp), lambda l: (l, 0, 0)),       # folded bias
        ],
        out_specs=(
            pl.BlockSpec((1, Bp, Hp), lambda l: (l, 0, 0)),
            pl.BlockSpec((1, Bp, Hp), lambda l: (l, 0, 0)),
            pl.BlockSpec((Bp, Hp), lambda l: (0, 0)),
        ),
        scratch_shapes=[pltpu.VMEM((Bp, 2 * Hp), jnp.bfloat16)],     # [x | h] carry
        input_output_aliases={1: 0, 2: 1},                           # in-place state update
        compiler_params=pltpu.CompilerParams(
            dimension_semantics=("arbitrary",),                      # sequential layer carry
            vmem_limit_bytes=vmem_limit),
    )(emb_p, hidden_p, cell_p, packed["w_cat"], packed["bias"])

    # ---- Kernel 2: fc_out over 128-aligned vocab tiles (streamed W_out). ----
    nv = Vp // TV
    pred_p = pl.pallas_call(
        _fc_out_kernel,
        out_shape=jax.ShapeDtypeStruct((Bp, Vp), jnp.float32),
        grid=(nv,),
        in_specs=[
            pl.BlockSpec((Bp, Hp), lambda j: (0, 0)),
            pl.BlockSpec((Hp, TV), lambda j: (0, j)),
            pl.BlockSpec((1, TV), lambda j: (0, j)),
        ],
        out_specs=pl.BlockSpec((Bp, TV), lambda j: (0, j)),
        compiler_params=pltpu.CompilerParams(
            dimension_semantics=("parallel",),                       # v7x: shard tiles over 2 TCs
            vmem_limit_bytes=vmem_limit),
    )(htop_p, packed["wout_t"], packed["bout"])

    pred = pred_p[:B, :V]
    h_new = h_new_p[:, :B, :H]
    c_new = c_new_p[:, :B, :H]
    return pred, h_new, c_new, None   # attention_weights is None for attention_type='none'


def _reference_forward(token_ids, hidden, cell, params, *, num_layers, hidden_dim):
    """Pure-JAX f32 reference reproducing PyTorch nn.LSTM single-step semantics."""
    H = hidden_dim
    x = params["embedding"][token_ids]
    h_out, c_out = [], []
    for l in range(num_layers):
        h, c = hidden[l], cell[l]
        gates = x @ params["wih"][l].T + params["bih"][l] + h @ params["whh"][l].T + params["bhh"][l]
        i_g = jax.nn.sigmoid(gates[:, 0 * H:1 * H])
        f_g = jax.nn.sigmoid(gates[:, 1 * H:2 * H])
        g_g = jnp.tanh(gates[:, 2 * H:3 * H])
        o_g = jax.nn.sigmoid(gates[:, 3 * H:4 * H])
        c_new = f_g * c + i_g * g_g
        h_new = o_g * jnp.tanh(c_new)
        h_out.append(h_new)
        c_out.append(c_new)
        x = h_new
    pred = x @ params["wout"].T + params["bout"]
    return pred, jnp.stack(h_out), jnp.stack(c_out)


if __name__ == "__main__":
    # Small, forward-consistent shapes (vocab chosen > 512 to exercise the V-grid).
    B = 2              # batch
    V = 1000           # output_dim (vocab)  -> padded to 1024, 2 tiles of 512
    E = 32             # embed_dim
    H = 32             # hidden_dim (E == H so the LSTM weight stack is uniform)
    L = 2              # num_layers
    # dropout = 0.0 (eval semantics -> identity)

    key = jax.random.PRNGKey(0)
    ks = jax.random.split(key, 12)
    s = 1.0 / (H ** 0.5)
    u = lambda k, shape: jax.random.uniform(k, shape, jnp.float32, minval=-s, maxval=s)

    params = {
        "embedding": u(ks[0], (V, E)),
        "wih": u(ks[1], (L, 4 * H, H)),    # layer 0 input size == E == H, gate order [i,f,g,o]
        "whh": u(ks[2], (L, 4 * H, H)),
        "bih": u(ks[3], (L, 4 * H)),
        "bhh": u(ks[4], (L, 4 * H)),
        "wout": u(ks[5], (V, H)),
        "bout": u(ks[6], (1, V)),
    }

    token_ids = jax.random.randint(ks[7], (B,), 0, V, dtype=jnp.int32)
    hidden = jax.random.normal(ks[8], (L, B, H), jnp.float32)
    cell = jax.random.normal(ks[9], (L, B, H), jnp.float32)

    packed = pack_decoder_params(params, num_layers=L, hidden_dim=H)
    pred, h_new, c_new, attn = decoder_forward(token_ids, hidden, cell, packed)
    jax.block_until_ready((pred, h_new, c_new))

    # Correctness check against pure-JAX f32 reference of the PyTorch semantics.
    # Tolerance loosened because matmul operands are bf16 (f32 accumulation).
    pred_r, h_r, c_r = _reference_forward(
        token_ids, hidden, cell, params, num_layers=L, hidden_dim=H)
    assert jnp.allclose(pred, pred_r, atol=2e-2, rtol=2e-2), float(jnp.abs(pred - pred_r).max())
    assert jnp.allclose(h_new, h_r, atol=2e-2, rtol=2e-2), float(jnp.abs(h_new - h_r).max())
    assert jnp.allclose(c_new, c_r, atol=2e-2, rtol=2e-2), float(jnp.abs(c_new - c_r).max())
    assert attn is None
    assert pred.shape == (B, V) and h_new.shape == (L, B, H) and c_new.shape == (L, B, H)

    print("KERNEL_OK")
</pallas_src>

<mosaic_0001>
module attributes {stable_mosaic.version = 11 : i64} {
  func.func @_lstm_layer_kernel(%arg0: i32, %arg1: memref<8x128xbf16, #tpu.memory_space<vmem>>, %arg2: memref<1x8x128xf32, #tpu.memory_space<vmem>>, %arg3: memref<1x8x128xf32, #tpu.memory_space<vmem>>, %arg4: memref<1x256x512xbf16, #tpu.memory_space<vmem>>, %arg5: memref<1x1x512xf32, #tpu.memory_space<vmem>>, %arg6: memref<1x8x128xf32, #tpu.memory_space<vmem>>, %arg7: memref<1x8x128xf32, #tpu.memory_space<vmem>>, %arg8: memref<8x128xbf16, #tpu.memory_space<vmem>>, %arg9: memref<8x256xbf16, #tpu.memory_space<vmem>>) attributes {dimension_semantics = [#tpu.dimension_semantics<arbitrary>], iteration_bounds = array<i64: 2>, scalar_prefetch = 0 : i64, scratch_operands = 1 : i64, tpu.core_type = #tpu.core_type<tc>, window_params = [{pipeline_mode = #tpu.pipeline_mode<synchronous>, transform_indices = @transform_0, window_bounds = array<i64: 8, 128>}, {transform_indices = @transform_1, window_bounds = array<i64: 1, 8, 128>}, {transform_indices = @transform_2, window_bounds = array<i64: 1, 8, 128>}, {transform_indices = @transform_3, window_bounds = array<i64: 1, 256, 512>}, {transform_indices = @transform_4, window_bounds = array<i64: 1, 1, 512>}, {transform_indices = @transform_5, window_bounds = array<i64: 1, 8, 128>}, {transform_indices = @transform_6, window_bounds = array<i64: 1, 8, 128>}, {pipeline_mode = #tpu.pipeline_mode<synchronous>, transform_indices = @transform_7, window_bounds = array<i64: 8, 128>}]} {
    %c0_i32 = arith.constant 0 : i32
    %0 = arith.cmpi eq, %arg0, %c0_i32 : i32
    %1 = arith.extui %0 : i1 to i32
    %c0_i32_0 = arith.constant 0 : i32
    %2 = arith.cmpi ne, %1, %c0_i32_0 : i32
    scf.if %2 {
      %c0_28 = arith.constant 0 : index
      %c0_29 = arith.constant 0 : index
      %51 = vector.load %arg1[%c0_28, %c0_29] : memref<8x128xbf16, #tpu.memory_space<vmem>>, vector<8x128xbf16>
      %c0_30 = arith.constant 0 : index
      %c0_31 = arith.constant 0 : index
      %52 = vector.load %arg9[%c0_30, %c0_31] : memref<8x256xbf16, #tpu.memory_space<vmem>>, vector<8x128xbf16>
      tpu.vector_store %arg9[%c0_30, %c0_31], %51 {strides = array<i32>} : memref<8x256xbf16, #tpu.memory_space<vmem>>, vector<8x128xbf16>,
    } else {
    }
    %c0 = arith.constant 0 : index
    %c0_1 = arith.constant 0 : index
    %c0_2 = arith.constant 0 : index
    %3 = vector.load %arg2[%c0, %c0_1, %c0_2] : memref<1x8x128xf32, #tpu.memory_space<vmem>>, vector<1x8x128xf32>
    %4 = vector.shape_cast %3 : vector<1x8x128xf32> to vector<8x128xf32>
    %5 = arith.truncf %4 : vector<8x128xf32> to vector<8x128xbf16>
    %c0_3 = arith.constant 0 : index
    %c128 = arith.constant 128 : index
    %6 = vector.load %arg9[%c0_3, %c128] : memref<8x256xbf16, #tpu.memory_space<vmem>>, vector<8x128xbf16>
    tpu.vector_store %arg9[%c0_3, %c128], %5 {strides = array<i32>} : memref<8x256xbf16, #tpu.memory_space<vmem>>, vector<8x128xbf16>,
    %c0_4 = arith.constant 0 : index
    %c0_5 = arith.constant 0 : index
    %7 = vector.load %arg9[%c0_4, %c0_5] : memref<8x256xbf16, #tpu.memory_space<vmem>>, vector<8x256xbf16>
    %c0_6 = arith.constant 0 : index
    %c0_7 = arith.constant 0 : index
    %c0_8 = arith.constant 0 : index
    %8 = vector.load %arg4[%c0_6, %c0_7, %c0_8] : memref<1x256x512xbf16, #tpu.memory_space<vmem>>, vector<1x256x512xbf16>
    %9 = vector.shape_cast %8 : vector<1x256x512xbf16> to vector<256x512xbf16>
    %cst = arith.constant dense<0.000000e+00> : vector<8x512xf32>
    %10 = tpu.matmul %7, %9, %cst {dimension_numbers = #tpu.dot_dimension_numbers<[1], [0], [0], [1], [0, 0, 1, 1], [], []>} : vector<8x256xbf16>, vector<256x512xbf16>, vector<8x512xf32> -> vector<8x512xf32>
    %c0_9 = arith.constant 0 : index
    %c0_10 = arith.constant 0 : index
    %c0_11 = arith.constant 0 : index
    %11 = vector.load %arg5[%c0_9, %c0_10, %c0_11] : memref<1x1x512xf32, #tpu.memory_space<vmem>>, vector<1x1x512xf32>
    %12 = vector.shape_cast %11 : vector<1x1x512xf32> to vector<1x512xf32>
    %13 = vector.broadcast %12 : vector<1x512xf32> to vector<8x512xf32>
    %14 = arith.addf %10, %13 : vector<8x512xf32>
    %15 = vector.extract_strided_slice %14 {offsets = [0, 0], sizes = [8, 128], strides = [1, 1]} : vector<8x512xf32> to vector<8x128xf32>
    %16 = arith.negf %15 : vector<8x128xf32>
    %17 = math.exp %16 : vector<8x128xf32>
    %cst_12 = arith.constant 1.000000e+00 : f32
    %18 = vector.broadcast %cst_12 : f32 to vector<8x128xf32>
    %19 = arith.addf %18, %17 : vector<8x128xf32>
    %20 = arith.divf %18, %19 : vector<8x128xf32>
    %21 = vector.extract_strided_slice %14 {offsets = [0, 128], sizes = [8, 128], strides = [1, 1]} : vector<8x512xf32> to vector<8x128xf32>
    %22 = arith.negf %21 : vector<8x128xf32>
    %23 = math.exp %22 : vector<8x128xf32>
    %cst_13 = arith.constant 1.000000e+00 : f32
    %24 = vector.broadcast %cst_13 : f32 to vector<8x128xf32>
    %25 = arith.addf %24, %23 : vector<8x128xf32>
    %26 = arith.divf %24, %25 : vector<8x128xf32>
    %27 = vector.extract_strided_slice %14 {offsets = [0, 256], sizes = [8, 128], strides = [1, 1]} : vector<8x512xf32> to vector<8x128xf32>
    %28 = math.tanh %27 : vector<8x128xf32>
    %29 = vector.extract_strided_slice %14 {offsets = [0, 384], sizes = [8, 128], strides = [1, 1]} : vector<8x512xf32> to vector<8x128xf32>
    %30 = arith.negf %29 : vector<8x128xf32>
    %31 = math.exp %30 : vector<8x128xf32>
    %cst_14 = arith.constant 1.000000e+00 : f32
    %32 = vector.broadcast %cst_14 : f32 to vector<8x128xf32>
    %33 = arith.addf %32, %31 : vector<8x128xf32>
    %34 = arith.divf %32, %33 : vector<8x128xf32>
    %c0_15 = arith.constant 0 : index
    %c0_16 = arith.constant 0 : index
    %c0_17 = arith.constant 0 : index
    %35 = vector.load %arg3[%c0_15, %c0_16, %c0_17] : memref<1x8x128xf32, #tpu.memory_space<vmem>>, vector<1x8x128xf32>
    %36 = vector.shape_cast %35 : vector<1x8x128xf32> to vector<8x128xf32>
    %37 = arith.mulf %26, %36 : vector<8x128xf32>
    %38 = arith.mulf %20, %28 : vector<8x128xf32>
    %39 = arith.addf %37, %38 : vector<8x128xf32>
    %40 = math.tanh %39 : vector<8x128xf32>
    %41 = arith.mulf %34, %40 : vector<8x128xf32>
    %c0_18 = arith.constant 0 : index
    %c0_19 = arith.constant 0 : index
    %c0_20 = arith.constant 0 : index
    %42 = vector.load %arg6[%c0_18, %c0_19, %c0_20] : memref<1x8x128xf32, #tpu.memory_space<vmem>>, vector<1x8x128xf32>
    %43 = vector.shape_cast %42 : vector<1x8x128xf32> to vector<8x128xf32>
    %44 = vector.shape_cast %41 : vector<8x128xf32> to vector<1x8x128xf32>
    tpu.vector_store %arg6[%c0_18, %c0_19, %c0_20], %44 {strides = array<i32>} : memref<1x8x128xf32, #tpu.memory_space<vmem>>, vector<1x8x128xf32>,
    %c0_21 = arith.constant 0 : index
    %c0_22 = arith.constant 0 : index
    %c0_23 = arith.constant 0 : index
    %45 = vector.load %arg7[%c0_21, %c0_22, %c0_23] : memref<1x8x128xf32, #tpu.memory_space<vmem>>, vector<1x8x128xf32>
    %46 = vector.shape_cast %45 : vector<1x8x128xf32> to vector<8x128xf32>
    %47 = vector.shape_cast %39 : vector<8x128xf32> to vector<1x8x128xf32>
    tpu.vector_store %arg7[%c0_21, %c0_22, %c0_23], %47 {strides = array<i32>} : memref<1x8x128xf32, #tpu.memory_space<vmem>>, vector<1x8x128xf32>,
    %48 = arith.truncf %41 : vector<8x128xf32> to vector<8x128xbf16>
    %c0_24 = arith.constant 0 : index
    %c0_25 = arith.constant 0 : index
    %49 = vector.load %arg9[%c0_24, %c0_25] : memref<8x256xbf16, #tpu.memory_space<vmem>>, vector<8x128xbf16>
    tpu.vector_store %arg9[%c0_24, %c0_25], %48 {strides = array<i32>} : memref<8x256xbf16, #tpu.memory_space<vmem>>, vector<8x128xbf16>,
    %c0_26 = arith.constant 0 : index
    %c0_27 = arith.constant 0 : index
    %50 = vector.load %arg8[%c0_26, %c0_27] : memref<8x128xbf16, #tpu.memory_space<vmem>>, vector<8x128xbf16>
    tpu.vector_store %arg8[%c0_26, %c0_27], %48 {strides = array<i32>} : memref<8x128xbf16, #tpu.memory_space<vmem>>, vector<8x128xbf16>,
    return
  }
  func.func @transform_0(%arg0: i32) -> (i32, i32) {
    %c0_i32 = arith.constant 0 : i32
    %c0_i32_0 = arith.constant 0 : i32
    %c0_i32_1 = arith.constant 0 : i32
    return %c0_i32, %c0_i32_0 : i32, i32
  }
  func.func @transform_1(%arg0: i32) -> (i32, i32, i32) {
    %c0_i32 = arith.constant 0 : i32
    %c0_i32_0 = arith.constant 0 : i32
    %c0_i32_1 = arith.constant 0 : i32
    return %arg0, %c0_i32, %c0_i32_0 : i32, i32, i32
  }
  func.func @transform_2(%arg0: i32) -> (i32, i32, i32) {
    %c0_i32 = arith.constant 0 : i32
    %c0_i32_0 = arith.constant 0 : i32
    %c0_i32_1 = arith.constant 0 : i32
    return %arg0, %c0_i32, %c0_i32_0 : i32, i32, i32
  }
  func.func @transform_3(%arg0: i32) -> (i32, i32, i32) {
    %c0_i32 = arith.constant 0 : i32
    %c0_i32_0 = arith.constant 0 : i32
    %c0_i32_1 = arith.constant 0 : i32
    return %arg0, %c0_i32, %c0_i32_0 : i32, i32, i32
  }
  func.func @transform_4(%arg0: i32) -> (i32, i32, i32) {
    %c0_i32 = arith.constant 0 : i32
    %c0_i32_0 = arith.constant 0 : i32
    %c0_i32_1 = arith.constant 0 : i32
    return %arg0, %c0_i32, %c0_i32_0 : i32, i32, i32
  }
  func.func @transform_5(%arg0: i32) -> (i32, i32, i32) {
    %c0_i32 = arith.constant 0 : i32
    %c0_i32_0 = arith.constant 0 : i32
    %c0_i32_1 = arith.constant 0 : i32
    return %arg0, %c0_i32, %c0_i32_0 : i32, i32, i32
  }
  func.func @transform_6(%arg0: i32) -> (i32, i32, i32) {
    %c0_i32 = arith.constant 0 : i32
    %c0_i32_0 = arith.constant 0 : i32
    %c0_i32_1 = arith.constant 0 : i32
    return %arg0, %c0_i32, %c0_i32_0 : i32, i32, i32
  }
  func.func @transform_7(%arg0: i32) -> (i32, i32) {
    %c0_i32 = arith.constant 0 : i32
    %c0_i32_0 = arith.constant 0 : i32
    %c0_i32_1 = arith.constant 0 : i32
    return %c0_i32, %c0_i32_0 : i32, i32
  }
}

</mosaic_0001>

<llo_original>
// kernel: tpu_custom_call.1
$region0: #{tpu_custom_call.1}
  #allocation0 [shape = 'u32[]', space=smem, size = 0x4, offset = 0x4, fixed_abs, tag = 'smem constant byte address 0x4 - core index']
  #allocation1 [shape = 'u32[144,128]{1,0:T(1,128)}', space=vmem, size = 0x12000, scoped, tag = 'internal scratch']
  #allocation2 [shape = 'bf16[8,256]{1,0:T(8,128)(2,1)}', space=vmem, size = 0x1000, scoped, tag = 'scratch operand']
  %s0 = inlined_call_operand.vmem [shape: bf16[8,128], index: 0, kind: input, shape index: {}]
  %s1 = inlined_call_operand.hbm [shape: f32[2,8,128], index: 1, kind: input, shape index: {}, may-alias: {1,5}]
  %s2 = inlined_call_operand.hbm [shape: f32[2,8,128], index: 2, kind: input, shape index: {}, may-alias: {2,6}]
  %s3 = inlined_call_operand.hbm [shape: bf16[2,256,512], index: 3, kind: input, shape index: {}]
  %s4 = inlined_call_operand.vmem [shape: f32[2,1,512], index: 4, kind: input, shape index: {}]
  %s5 = inlined_call_operand.hbm [shape: f32[2,8,128], index: 5, kind: output, shape index: {0}, may-alias: {1,5}]
  %s6 = inlined_call_operand.hbm [shape: f32[2,8,128], index: 6, kind: output, shape index: {1}, may-alias: {2,6}]
  %s7 = inlined_call_operand.hbm [shape: bf16[8,128], index: 7, kind: output, shape index: {2}]
  %8 = xla_tuple %s5, %s6, %s7
  %s9 = sld [smem:[#allocation0]]
  $region85: #{tpu_custom_call.1} parent=0
    _
  %s11 = ssub.s32 1, %s9
  %s12 = scalar_select 0, %s11, %s9
  $region1: #{tpu_custom_call.1} parent=0
    #allocation3 [shape = 'u8[8192]{0}', space=vmem, size = 0x2000, scoped, tag = 'input window, operand 1']
    #allocation4 [shape = 's32[2]{0}', space=sflag, size = 0x8, scoped, tag = 'scoped memory for tpu_custom_call.1']
    #allocation5 [shape = 's32[2]{0}', space=sflag, size = 0x8, scoped, tag = 'scoped memory for tpu_custom_call.1']
    #allocation6 [shape = 'u8[8192]{0}', space=vmem, size = 0x2000, scoped, tag = 'input window, operand 2']
    #allocation7 [shape = 's32[2]{0}', space=sflag, size = 0x8, scoped, tag = 'scoped memory for tpu_custom_call.1']
    #allocation8 [shape = 'u8[524288]{0}', space=vmem, size = 0x80000, scoped, tag = 'input window, operand 3']
    #allocation9 [shape = 'u8[8192]{0}', space=vmem, size = 0x2000, scoped, tag = 'output window, operand 0']
    #allocation10 [shape = 'u8[8192]{0}', space=vmem, size = 0x2000, scoped, tag = 'output window, operand 1']
    #allocation11 [shape = 's32[2]{0}', space=sflag, size = 0x8, scoped, tag = 'scoped memory for tpu_custom_call.1']
    #allocation12 [shape = 'u8[2048]{0}', space=vmem, size = 0x800, scoped, tag = 'output window, operand 2, single buffered']
    %13 = vsyncpa [#allocation4], 0
    %s14 = scalar_lea.sflag [#allocation4], 1
    %15 = vsyncpa %s14, 0
    %16 = vsyncpa [#allocation7], 0
    %s17 = scalar_lea.sflag [#allocation7], 1
    %18 = vsyncpa %s17, 0
    %19 = vsyncpa [#allocation5], 0
    %s20 = scalar_lea.sflag [#allocation5], 1
    %21 = vsyncpa %s20, 0
    %22 = vsyncpa [#allocation11], 0
    %s23 = scalar_lea.sflag [#allocation11], 1
    %24 = vsyncpa %s23, 0
    loop: start=0, step=1, limit=4
    $region2: #{tpu_custom_call.1} parent=1 // loop_pre_header
      _
    $region3: #{tpu_custom_call.1} parent=1 // loop_header
      %s26 = sphi 0, %s30
      %p27 = scmp.ge.s32.totalorder %s26, 4
      %s34 = sphi 0, %s34
      %s36 = sphi 0, %s34
      %s37 = sphi 0, %s36
      %s51 = sphi 0, %s37
      %s57 = sphi 0, %s59
      %s60 = sphi 0, %s57
      %s61 = sphi 0, %s60
      %s77 = sphi 0, %s61
      %s83 = sphi 0, %s85
      %s86 = sphi 0, %s83
      %s87 = sphi 0, %s86
      %s103 = sphi 0, %s87
      %s109 = sphi 0, %s111
      %s112 = sphi 0, %s109
      %s113 = sphi 0, %s112
      %s129 = sphi 0, %s113
      %s135 = sphi 0, %s137
      %s138 = sphi 0, %s135
      %s139 = sphi 0, %s138
      %s155 = sphi 0, %s139
      %s161 = sphi 0, %s163
      %s164 = sphi 0, %s161
      %s165 = sphi 0, %s164
      %s181 = sphi 0, %s165
      %s187 = sphi 0, %s189
      %s190 = sphi 0, %s187
      %s191 = sphi 0, %s190
      %s207 = sphi 0, %s191
      %s211 = sphi 0, %s211
      %s213 = sphi 0, %s211
      %s214 = sphi 0, %s213
      %s228 = sphi 0, %s214
    $region4: #{tpu_custom_call.1} parent=1 // loop_header_branch
      %29 = sbr.rel (%p27) target = $region8
    $region5: #{tpu_custom_call.1} parent=1 // loop_body
      %s31 = ssub.s32 %s26, 1
      %s32 = ssub.s32 %s26, 2
      %s33 = sadd.s32 %s26, 1
      %s35 = sadd.s32 %s34, 1
      %p38 = scmp.eq.s32.totalorder %s26, 1
      %p39 = scmp.ne.s32.totalorder %s34, %s36
      %p40 = scmp.eq.s32.totalorder %s26, 0
      %p41 = por %p39, %p40
      %p42 = scmp.ne.s32.totalorder %s34, %s36
      %p43 = scmp.eq.s32.totalorder %s31, 1
      %p44 = por %p42, %p43
      %p45 = scmp.ne.s32.totalorder %s36, %s37
      %p46 = scmp.eq.s32.totalorder %s31, 0
      %p47 = por %p45, %p46
      %p48 = scmp.ne.s32.totalorder %s36, %s37
      %p49 = scmp.eq.s32.totalorder %s32, 1
      %p50 = por %p48, %p49
      %p52 = scmp.ne.s32.totalorder %s37, %s51
      %p53 = scmp.eq.s32.totalorder %s32, 0
      %p54 = por %p52, %p53
      %s55 = ssub.s32 %s26, %s33
      %p56 = scmp.eq.s32.totalorder %s55, 0
      %s58 = sadd.s32 %s57, 1
      %s59 = scalar_select %p56, %s57, %s58
      %p62 = pneg %p56
      %p63 = scmp.eq.s32.totalorder %s26, 1
      %p64 = por %p62, %p63
      %p65 = scmp.ne.s32.totalorder %s57, %s60
      %p66 = scmp.eq.s32.totalorder %s26, 0
      %p67 = por %p65, %p66
      %p68 = scmp.ne.s32.totalorder %s57, %s60
      %p69 = scmp.eq.s32.totalorder %s31, 1
      %p70 = por %p68, %p69
      %p71 = scmp.ne.s32.totalorder %s60, %s61
      %p72 = scmp.eq.s32.totalorder %s31, 0
      %p73 = por %p71, %p72
      %p74 = scmp.ne.s32.totalorder %s60, %s61
      %p75 = scmp.eq.s32.totalorder %s32, 1
      %p76 = por %p74, %p75
      %p78 = scmp.ne.s32.totalorder %s61, %s77
      %p79 = scmp.eq.s32.totalorder %s32, 0
      %p80 = por %p78, %p79
      %s81 = ssub.s32 %s26, %s33
      %p82 = scmp.eq.s32.totalorder %s81, 0
      %s84 = sadd.s32 %s83, 1
      %s85 = scalar_select %p82, %s83, %s84
      %p88 = pneg %p82
      %p89 = scmp.eq.s32.totalorder %s26, 1
      %p90 = por %p88, %p89
      %p91 = scmp.ne.s32.totalorder %s83, %s86
      %p92 = scmp.eq.s32.totalorder %s26, 0
      %p93 = por %p91, %p92
      %p94 = scmp.ne.s32.totalorder %s83, %s86
      %p95 = scmp.eq.s32.totalorder %s31, 1
      %p96 = por %p94, %p95
      %p97 = scmp.ne.s32.totalorder %s86, %s87
      %p98 = scmp.eq.s32.totalorder %s31, 0
      %p99 = por %p97, %p98
      %p100 = scmp.ne.s32.totalorder %s86, %s87
      %p101 = scmp.eq.s32.totalorder %s32, 1
      %p102 = por %p100, %p101
      %p104 = scmp.ne.s32.totalorder %s87, %s103
      %p105 = scmp.eq.s32.totalorder %s32, 0
      %p106 = por %p104, %p105
      %s107 = ssub.s32 %s26, %s33
      %p108 = scmp.eq.s32.totalorder %s107, 0
      %s110 = sadd.s32 %s109, 1
      %s111 = scalar_select %p108, %s109, %s110
      %p114 = pneg %p108
      %p115 = scmp.eq.s32.totalorder %s26, 1
      %p116 = por %p114, %p115
      %p117 = scmp.ne.s32.totalorder %s109, %s112
      %p118 = scmp.eq.s32.totalorder %s26, 0
      %p119 = por %p117, %p118
      %p120 = scmp.ne.s32.totalorder %s109, %s112
      %p121 = scmp.eq.s32.totalorder %s31, 1
      %p122 = por %p120, %p121
      %p123 = scmp.ne.s32.totalorder %s112, %s113
      %p124 = scmp.eq.s32.totalorder %s31, 0
      %p125 = por %p123, %p124
      %p126 = scmp.ne.s32.totalorder %s112, %s113
      %p127 = scmp.eq.s32.totalorder %s32, 1
      %p128 = por %p126, %p127
      %p130 = scmp.ne.s32.totalorder %s113, %s129
      %p131 = scmp.eq.s32.totalorder %s32, 0
      %p132 = por %p130, %p131
      %s133 = ssub.s32 %s26, %s33
      %p134 = scmp.eq.s32.totalorder %s133, 0
      %s136 = sadd.s32 %s135, 1
      %s137 = scalar_select %p134, %s135, %s136
      %p140 = pneg %p134
      %p141 = scmp.eq.s32.totalorder %s26, 1
      %p142 = por %p140, %p141
      %p143 = scmp.ne.s32.totalorder %s135, %s138
      %p144 = scmp.eq.s32.totalorder %s26, 0
      %p145 = por %p143, %p144
      %p146 = scmp.ne.s32.totalorder %s135, %s138
      %p147 = scmp.eq.s32.totalorder %s31, 1
      %p148 = por %p146, %p147
      %p149 = scmp.ne.s32.totalorder %s138, %s139
      %p150 = scmp.eq.s32.totalorder %s31, 0
      %p151 = por %p149, %p150
      %p152 = scmp.ne.s32.totalorder %s138, %s139
      %p153 = scmp.eq.s32.totalorder %s32, 1
      %p154 = por %p152, %p153
      %p156 = scmp.ne.s32.totalorder %s139, %s155
      %p157 = scmp.eq.s32.totalorder %s32, 0
      %p158 = por %p156, %p157
      %s159 = ssub.s32 %s26, %s33
      %p160 = scmp.eq.s32.totalorder %s159, 0
      %s162 = sadd.s32 %s161, 1
      %s163 = scalar_select %p160, %s161, %s162
      %p166 = pneg %p160
      %p167 = scmp.eq.s32.totalorder %s26, 1
      %p168 = por %p166, %p167
      %p169 = scmp.ne.s32.totalorder %s161, %s164
      %p170 = scmp.eq.s32.totalorder %s26, 0
      %p171 = por %p169, %p170
      %p172 = scmp.ne.s32.totalorder %s161, %s164
      %p173 = scmp.eq.s32.totalorder %s31, 1
      %p174 = por %p172, %p173
      %p175 = scmp.ne.s32.totalorder %s164, %s165
      %p176 = scmp.eq.s32.totalorder %s31, 0
      %p177 = por %p175, %p176
      %p178 = scmp.ne.s32.totalorder %s164, %s165
      %p179 = scmp.eq.s32.totalorder %s32, 1
      %p180 = por %p178, %p179
      %p182 = scmp.ne.s32.totalorder %s165, %s181
      %p183 = scmp.eq.s32.totalorder %s32, 0
      %p184 = por %p182, %p183
      %s185 = ssub.s32 %s26, %s33
      %p186 = scmp.eq.s32.totalorder %s185, 0
      %s188 = sadd.s32 %s187, 1
      %s189 = scalar_select %p186, %s187, %s188
      %p192 = pneg %p186
      %p193 = scmp.eq.s32.totalorder %s26, 1
      %p194 = por %p192, %p193
      %p195 = scmp.ne.s32.totalorder %s187, %s190
      %p196 = scmp.eq.s32.totalorder %s26, 0
      %p197 = por %p195, %p196
      %p198 = scmp.ne.s32.totalorder %s187, %s190
      %p199 = scmp.eq.s32.totalorder %s31, 1
      %p200 = por %p198, %p199
      %p201 = scmp.ne.s32.totalorder %s190, %s191
      %p202 = scmp.eq.s32.totalorder %s31, 0
      %p203 = por %p201, %p202
      %p204 = scmp.ne.s32.totalorder %s190, %s191
      %p205 = scmp.eq.s32.totalorder %s32, 1
      %p206 = por %p204, %p205
      %p208 = scmp.ne.s32.totalorder %s191, %s207
      %p209 = scmp.eq.s32.totalorder %s32, 0
      %p210 = por %p208, %p209
      %s212 = sadd.s32 %s211, 1
      %p215 = scmp.eq.s32.totalorder %s26, 1
      %p216 = scmp.ne.s32.totalorder %s211, %s213
      %p217 = scmp.eq.s32.totalorder %s26, 0
      %p218 = por %p216, %p217
      %p219 = scmp.ne.s32.totalorder %s211, %s213
      %p220 = scmp.eq.s32.totalorder %s31, 1
      %p221 = por %p219, %p220
      %p222 = scmp.ne.s32.totalorder %s213, %s214
      %p223 = scmp.eq.s32.totalorder %s31, 0
      %p224 = por %p222, %p223
      %p225 = scmp.ne.s32.totalorder %s213, %s214
      %p226 = scmp.eq.s32.totalorder %s32, 1
      %p227 = por %p225, %p226
      %p229 = scmp.ne.s32.totalorder %s214, %s228
      %p230 = scmp.eq.s32.totalorder %s32, 0
      %p231 = por %p229, %p230
      %p232 = scmp.le.s32.totalorder 1, %s26
      %p233 = scmp.lt.s32.totalorder %s26, 3
      %p234 = pnand %p232, %p233
      %p235 = pneg %p234
      // Predicated region
      $region9: #{tpu_custom_call.1} parent=5 // pred_check
        _
      $region10: #{tpu_custom_call.1} parent=5 // pred_check_branch
        %237 = sbr.rel (%p234) target = $region12
      $region11: #{tpu_custom_call.1} parent=5 // pred_region
        %s238 = ssub.s32 %s26, 1
        // Predicated region
        $region13: #{tpu_custom_call.1} parent=11 // pred_check
          %p239 = pneg %p47
        $region14: #{tpu_custom_call.1} parent=11 // pred_check_branch
          %241 = sbr.rel (%p239) target = $region16
        $region15: #{tpu_custom_call.1} parent=11 // pred_region
          _
        $region16: #{tpu_custom_call.1} parent=11 // pred_fallthru
          _
      $region12: #{tpu_custom_call.1} parent=5 // pred_fallthru
        _
      %p242 = scmp.lt.s32.totalorder %s26, 2
      // Predicated region
      $region17: #{tpu_custom_call.1} parent=5 // pred_check
        %p243 = pneg %p242
      $region18: #{tpu_custom_call.1} parent=5 // pred_check_branch
        %245 = sbr.rel (%p243) target = $region20
      $region19: #{tpu_custom_call.1} parent=5 // pred_region
        // Predicated region
        $region21: #{tpu_custom_call.1} parent=19 // pred_check
          %p246 = pneg %p67
        $region22: #{tpu_custom_call.1} parent=19 // pred_check_branch
          %248 = sbr.rel (%p246) target = $region24
        $region23: #{tpu_custom_call.1} parent=19 // pred_region
          %s249 = sand.u32 %s57, 1
          %s250 = scalar_lea.sflag [#allocation4], %s249
          %s251 = sand.u32 %s57, 1
          %s252 = smul.addr %s251, 8
          %s253 = scalar_lea.vmem [#allocation3], %s252
          %s255 = ssub.s32 128, 128
          %256 = vsyncadd %s250, %s255
          %s257 = smul.addr %s26, 128
          %s258 = scalar_lea.hbm %s1, %s257
          %s260 = sshll.u32 %s253, 4
          %s261 = int_to_ptr.vmem [resolvable:$true] %s260
          %263 = dma.hbm_to_vmem [thread:$0]  %s258, 128, %s261, %s250
        $region24: #{tpu_custom_call.1} parent=19 // pred_fallthru
          _
        // Predicated region
        $region25: #{tpu_custom_call.1} parent=19 // pred_check
          %p264 = pneg %p93
        $region26: #{tpu_custom_call.1} parent=19 // pred_check_branch
          %266 = sbr.rel (%p264) target = $region28
        $region27: #{tpu_custom_call.1} parent=19 // pred_region
          %s267 = sand.u32 %s26, 1
          %s268 = scalar_lea.sflag [#allocation7], %s267
          %s269 = sand.u32 %s83, 1
          %s270 = smul.addr %s269, 8
          %s271 = scalar_lea.vmem [#allocation6], %s270
          %s273 = ssub.s32 128, 128
          %274 = vsyncadd %s268, %s273
          %s275 = smul.addr %s26, 128
          %s276 = scalar_lea.hbm %s2, %s275
          %s278 = sshll.u32 %s271, 4
          %s279 = int_to_ptr.vmem [resolvable:$true] %s278
          %281 = dma.hbm_to_vmem [thread:$0]  %s276, 128, %s279, %s268
        $region28: #{tpu_custom_call.1} parent=19 // pred_fallthru
          _
        // Predicated region
        $region29: #{tpu_custom_call.1} parent=19 // pred_check
          %p282 = pneg %p119
        $region30: #{tpu_custom_call.1} parent=19 // pred_check_branch
          %284 = sbr.rel (%p282) target = $region32
        $region31: #{tpu_custom_call.1} parent=19 // pred_region
          %s285 = sand.u32 %s26, 1
          %s286 = scalar_lea.sflag [#allocation7], %s285
          %s287 = sand.u32 %s109, 1
          %s288 = smul.addr %s287, 512
          %s289 = scalar_lea.vmem [#allocation8], %s288
          %s291 = ssub.s32 8192, 8192
          %292 = vsyncadd %s286, %s291
          %s293 = smul.addr %s26, 128
          %s294 = smul.addr %s293, 64
          %s295 = scalar_lea.hbm %s3, %s294
          %s296 = sshll.u32 %s289, 4
          %s297 = int_to_ptr.vmem [resolvable:$true] %s296
          %302 = dma.hbm_to_vmem [thread:$0]  %s295, 8192, %s297, %s286, 256, 256, 16
        $region32: #{tpu_custom_call.1} parent=19 // pred_fallthru
          _
        // Predicated region
        $region33: #{tpu_custom_call.1} parent=19 // pred_check
          %p303 = pneg %p145
        $region34: #{tpu_custom_call.1} parent=19 // pred_check_branch
          %305 = sbr.rel (%p303) target = $region36
        $region35: #{tpu_custom_call.1} parent=19 // pred_region
          %p306 = scmp.lt.s32.totalorder %s26, 1
          %s307 = scalar_select %p306, %s26, 1
          %s308 = smul.addr %s307, 4
          %s309 = scalar_lea.vmem %s4, %s308
        $region36: #{tpu_custom_call.1} parent=19 // pred_fallthru
          _
      $region20: #{tpu_custom_call.1} parent=5 // pred_fallthru
        _
      %p310 = scmp.le.s32.totalorder 1, %s26
      %p311 = scmp.lt.s32.totalorder %s26, 3
      %p312 = pnand %p310, %p311
      %p313 = pneg %p312
      // Predicated region
      $region37: #{tpu_custom_call.1} parent=5 // pred_check
        _
      $region38: #{tpu_custom_call.1} parent=5 // pred_check_branch
        %315 = sbr.rel (%p312) target = $region40
      $region39: #{tpu_custom_call.1} parent=5 // pred_region
        %s316 = ssub.s32 %s26, 1
        %s317 = sand.u32 %s60, 1
        %s318 = scalar_lea.sflag [#allocation4], %s317
        %s319 = sand.u32 %s60, 1
        %s320 = smul.addr %s319, 8
        %s321 = scalar_lea.vmem [#allocation3], %s320
        // Predicated region
        $region41: #{tpu_custom_call.1} parent=39 // pred_check
          %p322 = pneg %p73
        $region42: #{tpu_custom_call.1} parent=39 // pred_check_branch
          %324 = sbr.rel (%p322) target = $region44
        $region43: #{tpu_custom_call.1} parent=39 // pred_region
          %325 = dma.done %s318, 128
        $region44: #{tpu_custom_call.1} parent=39 // pred_fallthru
          _
        %s326 = sand.u32 %s31, 1
        %s327 = scalar_lea.sflag [#allocation7], %s326
        %s328 = sand.u32 %s86, 1
        %s329 = smul.addr %s328, 8
        %s330 = scalar_lea.vmem [#allocation6], %s329
        // Predicated region
        $region45: #{tpu_custom_call.1} parent=39 // pred_check
          %p331 = pneg %p99
        $region46: #{tpu_custom_call.1} parent=39 // pred_check_branch
          %333 = sbr.rel (%p331) target = $region48
        $region47: #{tpu_custom_call.1} parent=39 // pred_region
          %334 = dma.done %s327, 128
        $region48: #{tpu_custom_call.1} parent=39 // pred_fallthru
          _
        %s335 = sand.u32 %s31, 1
        %s336 = scalar_lea.sflag [#allocation7], %s335
        %s337 = sand.u32 %s112, 1
        %s338 = smul.addr %s337, 512
        %s339 = scalar_lea.vmem [#allocation8], %s338
        // Predicated region
        $region49: #{tpu_custom_call.1} parent=39 // pred_check
          %p340 = pneg %p125
        $region50: #{tpu_custom_call.1} parent=39 // pred_check_branch
          %342 = sbr.rel (%p340) target = $region52
        $region51: #{tpu_custom_call.1} parent=39 // pred_region
          %343 = dma.done %s336, 8192
        $region52: #{tpu_custom_call.1} parent=39 // pred_fallthru
          _
        %p344 = pneg %p47
        %p345 = pneg %p44
        %s346 = sand.u32 %s60, 1
        %s347 = scalar_lea.sflag [#allocation4], %s346
        %s348 = sand.u32 %s60, 1
        %s349 = smul.addr %s348, 8
        %s350 = scalar_lea.vmem [#allocation3], %s349
        %p351 = pneg %p73
        %p352 = pneg %p70
        %s353 = sand.u32 %s31, 1
        %s354 = scalar_lea.sflag [#allocation7], %s353
        %s355 = sand.u32 %s86, 1
        %s356 = smul.addr %s355, 8
        %s357 = scalar_lea.vmem [#allocation6], %s356
        %p358 = pneg %p99
        %p359 = pneg %p96
        %s360 = sand.u32 %s31, 1
        %s361 = scalar_lea.sflag [#allocation7], %s360
        %s362 = sand.u32 %s112, 1
        %s363 = smul.addr %s362, 512
        %s364 = scalar_lea.vmem [#allocation8], %s363
        %p365 = pneg %p125
        %p366 = pneg %p122
        %p367 = scmp.lt.s32.totalorder %s31, 1
        %s368 = scalar_select %p367, %s31, 1
        %s369 = smul.addr %s368, 4
        %s370 = scalar_lea.vmem %s4, %s369
        %p371 = pneg %p151
        %p372 = pneg %p148
        %p373 = pneg %p177
        %p374 = pneg %p174
        %s375 = sand.u32 %s164, 1
        %s376 = scalar_lea.sflag [#allocation5], %s375
        %s377 = sand.u32 %s164, 1
        %s378 = smul.addr %s377, 8
        %s379 = scalar_lea.vmem [#allocation9], %s378
        %p380 = pneg %p203
        %p381 = pneg %p200
        %s382 = sand.u32 %s31, 1
        %s383 = scalar_lea.sflag [#allocation11], %s382
        %s384 = sand.u32 %s190, 1
        %s385 = smul.addr %s384, 8
        %s386 = scalar_lea.vmem [#allocation10], %s385
        %p387 = pneg %p224
        %p388 = pneg %p221
        %p389 = scmp.lt.s32.totalorder %s31, 1
        %s390 = scalar_select %p389, %s31, 1
        %s391 = smul.addr %s390, 4
        %s392 = scalar_lea.vmem %s4, %s391
        %p393 = scmp.eq.s32.totalorder %s31, 0
        // Predicated region
        $region53: #{tpu_custom_call.1} parent=39 // pred_check
          %p394 = pneg %p393
        $region54: #{tpu_custom_call.1} parent=39 // pred_check_branch
          %396 = sbr.rel (%p394) target = $region56
        $region55: #{tpu_custom_call.1} parent=39 // pred_region
          %v397 = vld [vmem:[%s0] sm:$0xf]
          %398 = vst [vmem:[#allocation2] sm:$0xf] %v397
        $region56: #{tpu_custom_call.1} parent=39 // pred_fallthru
          _
        %v399 = vld [vmem:[%s321] sm:$0xff]
        %v400 = vpack.c.bf16 %v399, %v399
        %401 = vst [vmem:[#allocation2 + $0x4] sm:$0xf] %v400
        %v402 = vld [vmem:[#allocation2] sm:$0xff]
        %v403 = vld [vmem:[%s339] sm:$0xff]
        %v404 = vld [vmem:[%s339 + $0x8] sm:$0xff]
        %v405 = vld [vmem:[%s339 + $0x10] sm:$0xff]
        %v406 = vld [vmem:[%s339 + $0x18] sm:$0xff]
        %v407 = vld [vmem:[%s339 + $0x20] sm:$0xff]
        %v408 = vld [vmem:[%s339 + $0x28] sm:$0xff]
        %v409 = vld [vmem:[%s339 + $0x30] sm:$0xff]
        %v410 = vld [vmem:[%s339 + $0x38] sm:$0xff]
        %v411 = vld [vmem:[%s339 + $0x40] sm:$0xff]
        %v412 = vld [vmem:[%s339 + $0x48] sm:$0xff]
        %v413 = vld [vmem:[%s339 + $0x50] sm:$0xff]
        %v414 = vld [vmem:[%s339 + $0x58] sm:$0xff]
        %v415 = vld [vmem:[%s339 + $0x60] sm:$0xff]
        %v416 = vld [vmem:[%s339 + $0x68] sm:$0xff]
        %v417 = vld [vmem:[%s339 + $0x70] sm:$0xff]
        %v418 = vld [vmem:[%s339 + $0x78] sm:$0xff]
        %v419 = vld [vmem:[%s339 + $0x80] sm:$0xff]
        %v420 = vld [vmem:[%s339 + $0x88] sm:$0xff]
        %v421 = vld [vmem:[%s339 + $0x90] sm:$0xff]
        %v422 = vld [vmem:[%s339 + $0x98] sm:$0xff]
        %v423 = vld [vmem:[%s339 + $0xa0] sm:$0xff]
        %v424 = vld [vmem:[%s339 + $0xa8] sm:$0xff]
        %v425 = vld [vmem:[%s339 + $0xb0] sm:$0xff]
        %v426 = vld [vmem:[%s339 + $0xb8] sm:$0xff]
        %v427 = vld [vmem:[%s339 + $0xc0] sm:$0xff]
        %v428 = vld [vmem:[%s339 + $0xc8] sm:$0xff]
        %v429 = vld [vmem:[%s339 + $0xd0] sm:$0xff]
        %v430 = vld [vmem:[%s339 + $0xd8] sm:$0xff]
        %v431 = vld [vmem:[%s339 + $0xe0] sm:$0xff]
        %v432 = vld [vmem:[%s339 + $0xe8] sm:$0xff]
        %v433 = vld [vmem:[%s339 + $0xf0] sm:$0xff]
        %v434 = vld [vmem:[%s339 + $0xf8] sm:$0xff]
        %v435 = vld [vmem:[%s339 + $0x100] sm:$0xff]
        %v436 = vld [vmem:[%s339 + $0x108] sm:$0xff]
        %v437 = vld [vmem:[%s339 + $0x110] sm:$0xff]
        %v438 = vld [vmem:[%s339 + $0x118] sm:$0xff]
        %v439 = vld [vmem:[%s339 + $0x120] sm:$0xff]
        %v440 = vld [vmem:[%s339 + $0x128] sm:$0xff]
        %v441 = vld [vmem:[%s339 + $0x130] sm:$0xff]
        %v442 = vld [vmem:[%s339 + $0x138] sm:$0xff]
        %v443 = vld [vmem:[%s339 + $0x140] sm:$0xff]
        %v444 = vld [vmem:[%s339 + $0x148] sm:$0xff]
        %v445 = vld [vmem:[%s339 + $0x150] sm:$0xff]
        %v446 = vld [vmem:[%s339 + $0x158] sm:$0xff]
        %v447 = vld [vmem:[%s339 + $0x160] sm:$0xff]
        %v448 = vld [vmem:[%s339 + $0x168] sm:$0xff]
        %v449 = vld [vmem:[%s339 + $0x170] sm:$0xff]
        %v450 = vld [vmem:[%s339 + $0x178] sm:$0xff]
        %v451 = vld [vmem:[%s339 + $0x180] sm:$0xff]
        %v452 = vld [vmem:[%s339 + $0x188] sm:$0xff]
        %v453 = vld [vmem:[%s339 + $0x190] sm:$0xff]
        %v454 = vld [vmem:[%s339 + $0x198] sm:$0xff]
        %v455 = vld [vmem:[%s339 + $0x1a0] sm:$0xff]
        %v456 = vld [vmem:[%s339 + $0x1a8] sm:$0xff]
        %v457 = vld [vmem:[%s339 + $0x1b0] sm:$0xff]
        %v458 = vld [vmem:[%s339 + $0x1b8] sm:$0xff]
        %v459 = vld [vmem:[%s339 + $0x1c0] sm:$0xff]
        %v460 = vld [vmem:[%s339 + $0x1c8] sm:$0xff]
        %v461 = vld [vmem:[%s339 + $0x1d0] sm:$0xff]
        %v462 = vld [vmem:[%s339 + $0x1d8] sm:$0xff]
        %v463 = vld [vmem:[%s339 + $0x1e0] sm:$0xff]
        %v464 = vld [vmem:[%s339 + $0x1e8] sm:$0xff]
        %v465 = vld [vmem:[%s339 + $0x1f0] sm:$0xff]
        %v466 = vld [vmem:[%s339 + $0x1f8] sm:$0xff]
        %v467 = vld [vmem:[%s392] sm:$0xf]
        %v469 = vlaneseq
        %v470 = vshrl.u32 %v469, 7
        %v471 = vsub.s32 0, %v470
        %v472 = vrot.slane %v467, %v471
        %v473 = vlaneseq
        %v474 = vshrl.u32 %v473, 7
        %v475 = vsub.s32 1, %v474
        %v476 = vrot.slane %v467, %v475
        %v477 = vlaneseq
        %v478 = vshrl.u32 %v477, 7
        %v479 = vsub.s32 2, %v478
        %v480 = vrot.slane %v467, %v479
        %v481 = vlaneseq
        %v482 = vshrl.u32 %v481, 7
        %v483 = vsub.s32 3, %v482
        %v484 = vrot.slane %v467, %v483
        %v490 = vunpack.c.l.b16 %v402
        %v491 = vunpack.c.h.b16 %v402
        %v492 = vpack.c.b16 %v490, %v490
        %v493 = vpack.c.b16 %v491, %v491
        %v560 = vunpack.c.l.b16 %v403
        %v561 = vunpack.c.h.b16 %v403
        %v562 = vunpack.c.l.b16 %v404
        %v563 = vunpack.c.h.b16 %v404
        %v564 = vunpack.c.l.b16 %v405
        %v565 = vunpack.c.h.b16 %v405
        %v566 = vunpack.c.l.b16 %v406
        %v567 = vunpack.c.h.b16 %v406
        %v568 = vunpack.c.l.b16 %v407
        %v569 = vunpack.c.h.b16 %v407
        %v570 = vunpack.c.l.b16 %v408
        %v571 = vunpack.c.h.b16 %v408
        %v572 = vunpack.c.l.b16 %v409
        %v573 = vunpack.c.h.b16 %v409
        %v574 = vunpack.c.l.b16 %v410
        %v575 = vunpack.c.h.b16 %v410
        %v576 = vunpack.c.l.b16 %v411
        %v577 = vunpack.c.h.b16 %v411
        %v578 = vunpack.c.l.b16 %v412
        %v579 = vunpack.c.h.b16 %v412
        %v580 = vunpack.c.l.b16 %v413
        %v581 = vunpack.c.h.b16 %v413
        %v582 = vunpack.c.l.b16 %v414
        %v583 = vunpack.c.h.b16 %v414
        %v584 = vunpack.c.l.b16 %v415
        %v585 = vunpack.c.h.b16 %v415
        %v586 = vunpack.c.l.b16 %v416
        %v587 = vunpack.c.h.b16 %v416
        %v588 = vunpack.c.l.b16 %v417
        %v589 = vunpack.c.h.b16 %v417
        %v590 = vunpack.c.l.b16 %v418
        %v591 = vunpack.c.h.b16 %v418
        %v592 = vunpack.c.l.b16 %v419
        %v593 = vunpack.c.h.b16 %v419
        %v594 = vunpack.c.l.b16 %v420
        %v595 = vunpack.c.h.b16 %v420
        %v596 = vunpack.c.l.b16 %v421
        %v597 = vunpack.c.h.b16 %v421
        %v598 = vunpack.c.l.b16 %v422
        %v599 = vunpack.c.h.b16 %v422
        %v600 = vunpack.c.l.b16 %v423
        %v601 = vunpack.c.h.b16 %v423
        %v602 = vunpack.c.l.b16 %v424
        %v603 = vunpack.c.h.b16 %v424
        %v604 = vunpack.c.l.b16 %v425
        %v605 = vunpack.c.h.b16 %v425
        %v606 = vunpack.c.l.b16 %v426
        %v607 = vunpack.c.h.b16 %v426
        %v608 = vunpack.c.l.b16 %v427
        %v609 = vunpack.c.h.b16 %v427
        %v610 = vunpack.c.l.b16 %v428
        %v611 = vunpack.c.h.b16 %v428
        %v612 = vunpack.c.l.b16 %v429
        %v613 = vunpack.c.h.b16 %v429
        %v614 = vunpack.c.l.b16 %v430
        %v615 = vunpack.c.h.b16 %v430
        %v616 = vunpack.c.l.b16 %v431
        %v617 = vunpack.c.h.b16 %v431
        %v618 = vunpack.c.l.b16 %v432
        %v619 = vunpack.c.h.b16 %v432
        %v620 = vunpack.c.l.b16 %v433
        %v621 = vunpack.c.h.b16 %v433
        %v622 = vunpack.c.l.b16 %v434
        %v623 = vunpack.c.h.b16 %v434
        %v624 = vunpack.c.l.b16 %v435
        %v625 = vunpack.c.h.b16 %v435
        %v626 = vunpack.c.l.b16 %v436
        %v627 = vunpack.c.h.b16 %v436
        %v628 = vunpack.c.l.b16 %v437
        %v629 = vunpack.c.h.b16 %v437
        %v630 = vunpack.c.l.b16 %v438
        %v631 = vunpack.c.h.b16 %v438
        %v632 = vunpack.c.l.b16 %v439
        %v633 = vunpack.c.h.b16 %v439
        %v634 = vunpack.c.l.b16 %v440
        %v635 = vunpack.c.h.b16 %v440
        %v636 = vunpack.c.l.b16 %v441
        %v637 = vunpack.c.h.b16 %v441
        %v638 = vunpack.c.l.b16 %v442
        %v639 = vunpack.c.h.b16 %v442
        %v640 = vunpack.c.l.b16 %v443
        %v641 = vunpack.c.h.b16 %v443
        %v642 = vunpack.c.l.b16 %v444
        %v643 = vunpack.c.h.b16 %v444
        %v644 = vunpack.c.l.b16 %v445
        %v645 = vunpack.c.h.b16 %v445
        %v646 = vunpack.c.l.b16 %v446
        %v647 = vunpack.c.h.b16 %v446
        %v648 = vunpack.c.l.b16 %v447
        %v649 = vunpack.c.h.b16 %v447
        %v650 = vunpack.c.l.b16 %v448
        %v651 = vunpack.c.h.b16 %v448
        %v652 = vunpack.c.l.b16 %v449
        %v653 = vunpack.c.h.b16 %v449
        %v654 = vunpack.c.l.b16 %v450
        %v655 = vunpack.c.h.b16 %v450
        %v656 = vunpack.c.l.b16 %v451
        %v657 = vunpack.c.h.b16 %v451
        %v658 = vunpack.c.l.b16 %v452
        %v659 = vunpack.c.h.b16 %v452
        %v660 = vunpack.c.l.b16 %v453
        %v661 = vunpack.c.h.b16 %v453
        %v662 = vunpack.c.l.b16 %v454
        %v663 = vunpack.c.h.b16 %v454
        %v664 = vunpack.c.l.b16 %v455
        %v665 = vunpack.c.h.b16 %v455
        %v666 = vunpack.c.l.b16 %v456
        %v667 = vunpack.c.h.b16 %v456
        %v668 = vunpack.c.l.b16 %v457
        %v669 = vunpack.c.h.b16 %v457
        %v670 = vunpack.c.l.b16 %v458
        %v671 = vunpack.c.h.b16 %v458
        %v672 = vunpack.c.l.b16 %v459
        %v673 = vunpack.c.h.b16 %v459
        %v674 = vunpack.c.l.b16 %v460
        %v675 = vunpack.c.h.b16 %v460
        %v676 = vunpack.c.l.b16 %v461
        %v677 = vunpack.c.h.b16 %v461
        %v678 = vunpack.c.l.b16 %v462
        %v679 = vunpack.c.h.b16 %v462
        %v680 = vunpack.c.l.b16 %v463
        %v681 = vunpack.c.h.b16 %v463
        %v682 = vunpack.c.l.b16 %v464
        %v683 = vunpack.c.h.b16 %v464
        %v684 = vunpack.c.l.b16 %v465
        %v685 = vunpack.c.h.b16 %v465
        %v686 = vunpack.c.l.b16 %v466
        %v687 = vunpack.c.h.b16 %v466
        %v688 = vpack.c.b16 %v564, %v560
        %v689 = vpack.c.b16 %v565, %v561
        %v690 = vpack.c.b16 %v566, %v562
        %v691 = vpack.c.b16 %v567, %v563
        %v692 = vpack.c.b16 %v572, %v568
        %v693 = vpack.c.b16 %v573, %v569
        %v694 = vpack.c.b16 %v574, %v570
        %v695 = vpack.c.b16 %v575, %v571
        %v696 = vpack.c.b16 %v580, %v576
        %v697 = vpack.c.b16 %v581, %v577
        %v698 = vpack.c.b16 %v582, %v578
        %v699 = vpack.c.b16 %v583, %v579
        %v700 = vpack.c.b16 %v588, %v584
        %v701 = vpack.c.b16 %v589, %v585
        %v702 = vpack.c.b16 %v590, %v586
        %v703 = vpack.c.b16 %v591, %v587
        %v704 = vpack.c.b16 %v596, %v592
        %v705 = vpack.c.b16 %v597, %v593
        %v706 = vpack.c.b16 %v598, %v594
        %v707 = vpack.c.b16 %v599, %v595
        %v708 = vpack.c.b16 %v604, %v600
        %v709 = vpack.c.b16 %v605, %v601
        %v710 = vpack.c.b16 %v606, %v602
        %v711 = vpack.c.b16 %v607, %v603
        %v712 = vpack.c.b16 %v612, %v608
        %v713 = vpack.c.b16 %v613, %v609
        %v714 = vpack.c.b16 %v614, %v610
        %v715 = vpack.c.b16 %v615, %v611
        %v716 = vpack.c.b16 %v620, %v616
        %v717 = vpack.c.b16 %v621, %v617
        %v718 = vpack.c.b16 %v622, %v618
        %v719 = vpack.c.b16 %v623, %v619
        %v720 = vpack.c.b16 %v628, %v624
        %v721 = vpack.c.b16 %v629, %v625
        %v722 = vpack.c.b16 %v630, %v626
        %v723 = vpack.c.b16 %v631, %v627
        %v724 = vpack.c.b16 %v636, %v632
        %v725 = vpack.c.b16 %v637, %v633
        %v726 = vpack.c.b16 %v638, %v634
        %v727 = vpack.c.b16 %v639, %v635
        %v728 = vpack.c.b16 %v644, %v640
        %v729 = vpack.c.b16 %v645, %v641
        %v730 = vpack.c.b16 %v646, %v642
        %v731 = vpack.c.b16 %v647, %v643
        %v732 = vpack.c.b16 %v652, %v648
        %v733 = vpack.c.b16 %v653, %v649
        %v734 = vpack.c.b16 %v654, %v650
        %v735 = vpack.c.b16 %v655, %v651
        %v736 = vpack.c.b16 %v660, %v656
        %v737 = vpack.c.b16 %v661, %v657
        %v738 = vpack.c.b16 %v662, %v658
        %v739 = vpack.c.b16 %v663, %v659
        %v740 = vpack.c.b16 %v668, %v664
        %v741 = vpack.c.b16 %v669, %v665
        %v742 = vpack.c.b16 %v670, %v666
        %v743 = vpack.c.b16 %v671, %v667
        %v744 = vpack.c.b16 %v676, %v672
        %v745 = vpack.c.b16 %v677, %v673
        %v746 = vpack.c.b16 %v678, %v674
        %v747 = vpack.c.b16 %v679, %v675
        %v748 = vpack.c.b16 %v684, %v680
        %v749 = vpack.c.b16 %v685, %v681
        %v750 = vpack.c.b16 %v686, %v682
        %v751 = vpack.c.b16 %v687, %v683
        %816 = vmatprep.subr.bf16.mxu0 %v689
        %817 = vmatpush1.bf16.msra.mxu0 %v688
        %818 = vmatprep.subr.bf16.mxu0 %v693
        %819 = vmatpush1.bf16.msra.mxu0 %v692
        %820 = vmatprep.subr.bf16.mxu0 %v697
        %821 = vmatpush1.bf16.msra.mxu0 %v696
        %822 = vmatprep.subr.bf16.mxu0 %v701
        %823 = vmatpush1.bf16.msra.mxu0 %v700
        %824 = vmatprep.subr.bf16.mxu0 %v705
        %825 = vmatpush1.bf16.msra.mxu0 %v704
        %826 = vmatprep.subr.bf16.mxu0 %v709
        %827 = vmatpush1.bf16.msra.mxu0 %v708
        %828 = vmatprep.subr.bf16.mxu0 %v713
        %829 = vmatpush1.bf16.msra.mxu0 %v712
        %830 = vmatprep.subr.bf16.mxu0 %v717
        %831 = vmatpush1.bf16.msra.mxu0 %v716
        %832 = vmatprep.subr.bf16.mxu0 %v721
        %833 = vmatpush1.bf16.msra.mxu0 %v720
        %834 = vmatprep.subr.bf16.mxu0 %v725
        %835 = vmatpush1.bf16.msra.mxu0 %v724
        %836 = vmatprep.subr.bf16.mxu0 %v729
        %837 = vmatpush1.bf16.msra.mxu0 %v728
        %838 = vmatprep.subr.bf16.mxu0 %v733
        %839 = vmatpush1.bf16.msra.mxu0 %v732
        %840 = vmatprep.subr.bf16.mxu0 %v737
        %841 = vmatpush1.bf16.msra.mxu0 %v736
        %842 = vmatprep.subr.bf16.mxu0 %v741
        %843 = vmatpush1.bf16.msra.mxu0 %v740
        %844 = vmatprep.subr.bf16.mxu0 %v745
        %845 = vmatpush1.bf16.msra.mxu0 %v744
        %846 = vmatprep.subr.bf16.mxu0 %v749
        %847 = vmatpush1.bf16.msra.mxu0 %v748
        %848 = vmatprep.mubr.bf16.mxu0 %v493
        %849 = vmatmul.mubr.bf16.gmra.mrb[0].mxu0 %v492
        %v850 = vpop.f32.mrb[0].mxu0
        %v851 = vadd.f32 %v472, %v850
        %v852 = vpop.f32.mrb[0].mxu0
        %v853 = vadd.f32 %v476, %v852
        %v854 = vpop.f32.mrb[0].mxu0
        %v855 = vpop.f32.mrb[0].mxu0
        %856 = vdwg.mxu0
        %857 = vmatprep.subr.bf16.mxu0 %v691
        %858 = vmatpush1.bf16.msra.mxu0 %v690
        %859 = vmatprep.subr.bf16.mxu0 %v695
        %860 = vmatpush1.bf16.msra.mxu0 %v694
        %861 = vmatprep.subr.bf16.mxu0 %v699
        %862 = vmatpush1.bf16.msra.mxu0 %v698
        %863 = vmatprep.subr.bf16.mxu0 %v703
        %864 = vmatpush1.bf16.msra.mxu0 %v702
        %865 = vmatprep.subr.bf16.mxu0 %v707
        %866 = vmatpush1.bf16.msra.mxu0 %v706
        %867 = vmatprep.subr.bf16.mxu0 %v711
        %868 = vmatpush1.bf16.msra.mxu0 %v710
        %869 = vmatprep.subr.bf16.mxu0 %v715
        %870 = vmatpush1.bf16.msra.mxu0 %v714
        %871 = vmatprep.subr.bf16.mxu0 %v719
        %872 = vmatpush1.bf16.msra.mxu0 %v718
        %873 = vmatprep.subr.bf16.mxu0 %v723
        %874 = vmatpush1.bf16.msra.mxu0 %v722
        %875 = vmatprep.subr.bf16.mxu0 %v727
        %876 = vmatpush1.bf16.msra.mxu0 %v726
        %877 = vmatprep.subr.bf16.mxu0 %v731
        %878 = vmatpush1.bf16.msra.mxu0 %v730
        %879 = vmatprep.subr.bf16.mxu0 %v735
        %880 = vmatpush1.bf16.msra.mxu0 %v734
        %881 = vmatprep.subr.bf16.mxu0 %v739
        %882 = vmatpush1.bf16.msra.mxu0 %v738
        %883 = vmatprep.subr.bf16.mxu0 %v743
        %884 = vmatpush1.bf16.msra.mxu0 %v742
        %885 = vmatprep.subr.bf16.mxu0 %v747
        %886 = vmatpush1.bf16.msra.mxu0 %v746
        %887 = vmatprep.subr.bf16.mxu0 %v751
        %888 = vmatpush1.bf16.msra.mxu0 %v750
        %889 = vmatprep.mubr.bf16.mxu0 %v493
        %890 = vmatmul.mubr.bf16.gmra.mrb[0].mxu0 %v492
        %v891 = vpop.f32.mrb[0].mxu0
        %v892 = vadd.f32 %v480, %v891
        %v893 = vpop.f32.mrb[0].mxu0
        %v894 = vadd.f32 %v484, %v893
        %v895 = vpop.f32.mrb[0].mxu0
        %v896 = vpop.f32.mrb[0].mxu0
        %897 = vdwg.mxu0
        %v898 = vxor.u32 %v851, 2147483648
        %v899 = vmul.f32 %v898, 1.442695
        %v900 = vpow.pop %v899
        %v901 = vadd.f32 %v900, 1.0
        %v902 = vrcp.pop %v901
        %v903 = vmul.f32 1.0, %v902
        %v904 = vxor.u32 %v853, 2147483648
        %v905 = vmul.f32 %v904, 1.442695
        %v906 = vpow.pop %v905
        %v907 = vadd.f32 %v906, 1.0
        %v908 = vrcp.pop %v907
        %v909 = vmul.f32 1.0, %v908
        %v910 = vtanh.pop %v892
        %v911 = vxor.u32 %v894, 2147483648
        %v912 = vmul.f32 %v911, 1.442695
        %v913 = vpow.pop %v912
        %v914 = vadd.f32 %v913, 1.0
        %v915 = vrcp.pop %v914
        %v916 = vmul.f32 1.0, %v915
        %v917 = vld [vmem:[%s330] sm:$0xff]
        %v918 = vmul.f32 %v909, %v917
        %v919 = vmul.f32 %v903, %v910
        %v920 = vadd.f32 %v918, %v919
        %v921 = vtanh.pop %v920
        %v922 = vmul.f32 %v916, %v921
        %923 = vst [vmem:[%s379] sm:$0xff] %v922
        %924 = vst [vmem:[%s386] sm:$0xff] %v920
        %v925 = vpack.c.bf16 %v922, %v922
        %926 = vst [vmem:[#allocation2] sm:$0xf] %v925
        %927 = vst [vmem:[#allocation12] sm:$0xf] %v925
        %s928 = sand.u32 %s164, 1
        %s929 = scalar_lea.sflag [#allocation5], %s928
        %s930 = sand.u32 %s164, 1
        %s931 = smul.addr %s930, 8
        %s932 = scalar_lea.vmem [#allocation9], %s931
        %s933 = sand.u32 %s31, 1
        %s934 = scalar_lea.sflag [#allocation11], %s933
        %s935 = sand.u32 %s190, 1
        %s936 = smul.addr %s935, 8
        %s937 = scalar_lea.vmem [#allocation10], %s936
        // Predicated region
        $region57: #{tpu_custom_call.1} parent=39 // pred_check
          %p938 = pneg %p174
        $region58: #{tpu_custom_call.1} parent=39 // pred_check_branch
          %940 = sbr.rel (%p938) target = $region60
        $region59: #{tpu_custom_call.1} parent=39 // pred_region
          %s942 = ssub.s32 128, 128
          %943 = vsyncadd %s929, %s942
          %s944 = smul.addr %s31, 128
          %s945 = scalar_lea.hbm %s5, %s944
          %s947 = sshll.u32 %s932, 4
          %s948 = int_to_ptr.vmem [resolvable:$true] %s947
          %950 = dma.vmem_to_hbm [thread:$0]  %s948, 128, %s945, %s929
        $region60: #{tpu_custom_call.1} parent=39 // pred_fallthru
          _
        // Predicated region
        $region61: #{tpu_custom_call.1} parent=39 // pred_check
          %p951 = pneg %p200
        $region62: #{tpu_custom_call.1} parent=39 // pred_check_branch
          %953 = sbr.rel (%p951) target = $region64
        $region63: #{tpu_custom_call.1} parent=39 // pred_region
          %s955 = ssub.s32 128, 128
          %956 = vsyncadd %s934, %s955
          %s957 = smul.addr %s31, 128
          %s958 = scalar_lea.hbm %s6, %s957
          %s960 = sshll.u32 %s937, 4
          %s961 = int_to_ptr.vmem [resolvable:$true] %s960
          %963 = dma.vmem_to_hbm [thread:$0]  %s961, 128, %s958, %s934
        $region64: #{tpu_custom_call.1} parent=39 // pred_fallthru
          _
        // Predicated region
        $region65: #{tpu_custom_call.1} parent=39 // pred_check
          %p964 = pneg %p221
        $region66: #{tpu_custom_call.1} parent=39 // pred_check_branch
          %966 = sbr.rel (%p964) target = $region68
        $region67: #{tpu_custom_call.1} parent=39 // pred_region
          %s968 = ssub.s32 64, 64
          %969 = vsyncadd [#allocation11], %s968
          %s971 = sshll.u32 [#allocation12], 4
          %s972 = int_to_ptr.vmem [resolvable:$true] %s971
          %974 = dma.vmem_to_hbm [thread:$0]  %s972, 64, %s7, [#allocation11]
        $region68: #{tpu_custom_call.1} parent=39 // pred_fallthru
          _
        // Predicated region
        $region69: #{tpu_custom_call.1} parent=39 // pred_check
          %p975 = pneg %p221
        $region70: #{tpu_custom_call.1} parent=39 // pred_check_branch
          %977 = sbr.rel (%p975) target = $region72
        $region71: #{tpu_custom_call.1} parent=39 // pred_region
          %978 = dma.done [#allocation11], 64
        $region72: #{tpu_custom_call.1} parent=39 // pred_fallthru
          _
      $region40: #{tpu_custom_call.1} parent=5 // pred_fallthru
        _
      %p979 = scmp.le.s32.totalorder 2, %s26
      // Predicated region
      $region73: #{tpu_custom_call.1} parent=5 // pred_check
        %p980 = pneg %p979
      $region74: #{tpu_custom_call.1} parent=5 // pred_check_branch
        %982 = sbr.rel (%p980) target = $region76
      $region75: #{tpu_custom_call.1} parent=5 // pred_region
        %s983 = ssub.s32 %s26, 2
        // Predicated region
        $region77: #{tpu_custom_call.1} parent=75 // pred_check
          %p984 = pneg %p180
        $region78: #{tpu_custom_call.1} parent=75 // pred_check_branch
          %986 = sbr.rel (%p984) target = $region80
        $region79: #{tpu_custom_call.1} parent=75 // pred_region
          %s987 = sand.u32 %s165, 1
          %s988 = scalar_lea.sflag [#allocation5], %s987
          %s989 = sand.u32 %s165, 1
          %s990 = smul.addr %s989, 8
          %s991 = scalar_lea.vmem [#allocation9], %s990
          %992 = dma.done %s988, 128
        $region80: #{tpu_custom_call.1} parent=75 // pred_fallthru
          _
        // Predicated region
        $region81: #{tpu_custom_call.1} parent=75 // pred_check
          %p993 = pneg %p206
        $region82: #{tpu_custom_call.1} parent=75 // pred_check_branch
          %995 = sbr.rel (%p993) target = $region84
        $region83: #{tpu_custom_call.1} parent=75 // pred_region
          %s996 = sand.u32 %s32, 1
          %s997 = scalar_lea.sflag [#allocation11], %s996
          %s998 = sand.u32 %s191, 1
          %s999 = smul.addr %s998, 8
          %s1000 = scalar_lea.vmem [#allocation10], %s999
          %1001 = dma.done %s997, 128
        $region84: #{tpu_custom_call.1} parent=75 // pred_fallthru
          _
      $region76: #{tpu_custom_call.1} parent=5 // pred_fallthru
        _
    $region6: #{tpu_custom_call.1} parent=1 // loop_footer
      %s30 = sadd.s32 1, %s26
    $region7: #{tpu_custom_call.1} parent=1 // loop_footer_branch
      %25 = sbr.rel target = $region3
    $region8: #{tpu_custom_call.1} parent=1 // loop_exit
      _
    %1002 = vsyncpa [#allocation4], 1
    %s1003 = scalar_lea.sflag [#allocation4], 1
    %1004 = vsyncpa %s1003, 1
    %1005 = vsyncpa [#allocation7], 1
    %s1006 = scalar_lea.sflag [#allocation7], 1
    %1007 = vsyncpa %s1006, 1
    %1008 = vsyncpa [#allocation5], 1
    %s1009 = scalar_lea.sflag [#allocation5], 1
    %1010 = vsyncpa %s1009, 1
    %1011 = vsyncpa [#allocation11], 1
    %s1012 = scalar_lea.sflag [#allocation11], 1
    %1013 = vsyncpa %s1012, 1

</llo_original>
